<compile_context>
chip_gen: v7x
topology: tpu7x:2x2x1
jax: 0.10.0
libtpu: 0.0.40
codegen_flags: <defaults>
</compile_context>

<pallas_src>
import functools

import jax
import jax.numpy as jnp
import numpy as np
from jax import lax
from jax.experimental import pallas as pl
from jax.experimental.pallas import tpu as pltpu


def _vmem_capacity_bytes():
    try:
        return int(pltpu.get_tpu_info().vmem_capacity_bytes)
    except Exception:
        return 64 << 20                 # v7x floor; conservative fallback


def _pick_block_b(B, S, H, V, Q, stream_bytes, align, vmem_cap):
    """Batch rows per grid step: ~2 MiB of streamed data per block, VMEM-capped."""
    row_bytes = S * (H + V) * stream_bytes + Q * 4 + 4
    bt = max(1, (2 << 20) // max(row_bytes, 1))

    def vmem_est(n):
        ins = 2 * n * row_bytes                                   # double-buffered inputs
        outs = 2 * n * (V + S) * 4                                # double-buffered outputs
        temps = 4 * n * (S * min(H, 512) + min(S, 256) * V + 2 * S)
        return ins + outs + temps + 4 * (Q * H + H)

    budget = int(vmem_cap * 0.6)
    while bt > 1 and vmem_est(bt) > budget:
        bt //= 2
    if bt >= B:
        bt = B
        if B >= 2 * align:              # >=2 grid steps: DMA overlap + v7x 2nd TensorCore
            bt = max(align, ((B + 1) // 2 // align) * align)
    else:
        bt = min(max(align, (bt // align) * align), B)
    return max(1, bt)


def _bahdanau_kernel(len_ref, q_ref, pk_ref, v_ref, wq_ref, ve_ref,
                     ctx_ref, alpha_ref, *, h_chunk, s_chunk):
    # len_ref: [Bt,1] i32   q_ref: [Bt,Q]        pk_ref: [Bt,S,H]   v_ref: [Bt,S,V]
    # wq_ref:  [Q,H] f32    ve_ref: [1,H] f32    ctx_ref: [Bt,V]    alpha_ref: [Bt,S]
    f32 = jnp.float32
    Bt, S, H = pk_ref.shape
    V = v_ref.shape[-1]

    # query_layer(query): one MXU matmul for the whole batch block.
    qp = jnp.dot(q_ref[...].astype(f32), wq_ref[...],
                 preferred_element_type=f32)                          # [Bt, H]
    ve_row = ve_ref[...]                                              # [1, H] f32

    # energy_layer(tanh(qp + proj_key)), chunked over H so no full [Bt,S,H] f32
    # temporary is materialized.  Scores stay in the reduce's native [Bt,S,1]
    # layout (S on sublanes) all the way through the softmax.
    scores = jnp.zeros((Bt, S, 1), dtype=f32)
    for h0 in range(0, H, h_chunk):
        h1 = min(H, h0 + h_chunk)
        pk_c = pk_ref[:, :, h0:h1].astype(f32)                        # [Bt,S,Hc]
        t = jnp.tanh(qp[:, None, h0:h1] + pk_c)                       # EUP tanh
        ve_c = ve_row[:, h0:h1][:, None, :]                           # [1,1,Hc]
        scores = scores + jnp.sum(t * ve_c, axis=-1, keepdims=True)   # lane reduce

    # masked_fill_(mask == 0, -inf): mask rebuilt in-kernel from per-row lengths.
    # -1e30 (finite) keeps fully-masked / padded remainder rows at uniform alphas
    # instead of NaN; masked positions still get exactly 0 probability.
    pos = lax.broadcasted_iota(jnp.int32, (Bt, S, 1), 1)
    valid = pos < len_ref[...][:, :, None]                            # [Bt,S,1]
    scores = jnp.where(valid, scores, -1e30)

    # softmax over S (sublane axis), kept unnormalized until the very end.
    m = jnp.max(scores, axis=1, keepdims=True)                        # [Bt,1,1]
    e = jnp.exp(scores - m)                                           # [Bt,S,1]
    denom = jnp.sum(e, axis=1, keepdims=True)                         # [Bt,1,1]
    inv = pl.reciprocal(denom, approx=True)                           # EUP slot
    inv = inv * (2.0 - denom * inv)                                   # Newton -> f32 accurate

    # context = bmm(alphas, value): computed from the UNNORMALIZED e in its native
    # layout (e broadcasts over the V lane axis of value), scaled by inv at the end.
    # Chunked over S so no full [Bt,S,V] f32 temporary is materialized.
    # TODO(synk): for very large S*V route this through the idle MXU (batched dot_general).
    ctx = jnp.zeros((Bt, 1, V), dtype=f32)
    for s0 in range(0, S, s_chunk):
        s1 = min(S, s0 + s_chunk)
        v_c = v_ref[:, s0:s1, :].astype(f32)                          # [Bt,Sc,V]
        ctx = ctx + jnp.sum(e[:, s0:s1, :] * v_c, axis=1, keepdims=True)

    ctx_ref[...] = (ctx[:, 0, :] * inv[:, 0, :]).astype(ctx_ref.dtype)
    # Lane-dense [Bt,S] alphas: the single sublane->lane relayout, done once for the
    # store so the alphas output is an unmasked lane-dense vst.
    alpha_ref[...] = (e[:, :, 0] * inv[:, :, 0]).astype(alpha_ref.dtype)


def bahdanau_attention(query, proj_key, value, mask, wq, ve, *,
                       block_b=None, stream_dtype=None):
    """Fused Bahdanau attention forward.

    wq = query_layer.weight.T  [Q,H];  ve = energy_layer.weight.T  [H,1].
    Returns (context [B,1,V], alphas [B,1,S]).
    """
    B, _, Q = query.shape
    _, S, H = proj_key.shape
    V = value.shape[-1]
    out_dtype = value.dtype

    stream_dtype = proj_key.dtype if stream_dtype is None else jnp.dtype(stream_dtype)
    stream_bytes = jnp.dtype(stream_dtype).itemsize
    align = 16 if stream_bytes < 4 else 8          # (8,128)/(16,128) sublane tiles

    vmem_cap = _vmem_capacity_bytes()
    Bt = block_b if block_b is not None else _pick_block_b(
        B, S, H, V, Q, stream_bytes, align, vmem_cap)
    Bt = max(1, min(Bt, B))
    grid = (pl.cdiv(B, Bt),)

    # Lane-dense 2D views (unit-dim reshapes, free).  proj_key/value may be streamed
    # in bf16 to halve the dominant HBM traffic (compute stays f32 in the kernel).
    q2 = query.reshape(B, Q)
    pk_s = proj_key.astype(stream_dtype)
    v_s = value.astype(stream_dtype)
    wq_f = wq.astype(jnp.float32)
    ve_row = ve.reshape(1, H).astype(jnp.float32)

    # Per-row source lengths (Bahdanau source masks are contiguous length masks),
    # padded to a whole number of batch blocks so the last block's mask is well
    # defined.  Removes the [B,S] mask DMA stream and its VMEM double buffer.
    # TODO(synk): arbitrary (non-prefix) masks would need the mask stream back.
    lengths = jnp.sum(mask.reshape(B, S) != 0, axis=-1, dtype=jnp.int32)
    b_pad = grid[0] * Bt
    lengths = jnp.pad(lengths, (0, b_pad - B)).reshape(b_pad, 1)

    kernel = functools.partial(_bahdanau_kernel,
                               h_chunk=min(H, 512), s_chunk=min(S, 256))

    ctx2, alphas2 = pl.pallas_call(
        kernel,
        out_shape=(
            jax.ShapeDtypeStruct((B, V), out_dtype),
            jax.ShapeDtypeStruct((B, S), jnp.float32),
        ),
        grid_spec=pltpu.PrefetchScalarGridSpec(
            num_scalar_prefetch=0,
            grid=grid,
            in_specs=[
                pl.BlockSpec((Bt, 1), lambda b: (b, 0)),          # lengths
                pl.BlockSpec((Bt, Q), lambda b: (b, 0)),          # query
                pl.BlockSpec((Bt, S, H), lambda b: (b, 0, 0)),    # proj_key (streamed)
                pl.BlockSpec((Bt, S, V), lambda b: (b, 0, 0)),    # value    (streamed)
                pl.BlockSpec((Q, H), lambda b: (0, 0)),           # Wq
                pl.BlockSpec((1, H), lambda b: (0, 0)),           # energy row vector
            ],
            out_specs=[
                pl.BlockSpec((Bt, V), lambda b: (b, 0)),          # context
                pl.BlockSpec((Bt, S), lambda b: (b, 0)),          # alphas (lane-dense)
            ],
        ),
        compiler_params=pltpu.CompilerParams(
            dimension_semantics=("parallel",),                    # batch blocks independent
            vmem_limit_bytes=min(int(vmem_cap * 0.9), 120 << 20),
        ),
    )(lengths, q2, pk_s, v_s, wq_f, ve_row)

    # Back to the PyTorch [B, 1, *] convention (unit-dim reshapes, free).
    return ctx2.reshape(B, 1, V), alphas2.reshape(B, 1, S)


def reference(query, proj_key, value, mask, wq, ve):
    # Pure-JAX replica of the PyTorch forward for verification.
    qp = jnp.einsum("biq,qh->bih", query, wq)
    scores = jnp.einsum("bsh,ho->bso", jnp.tanh(qp + proj_key), ve)   # [B,S,1]
    scores = jnp.transpose(scores, (0, 2, 1))                         # [B,1,S]
    scores = jnp.where(mask == 0, -jnp.inf, scores)
    alphas = jax.nn.softmax(scores, axis=-1)
    ctx = jnp.einsum("bqs,bsv->bqv", alphas, value)
    return ctx, alphas


if __name__ == "__main__":
    # ---- Test 1: tiny shapes, f32 streaming, strict check vs the reference ----
    B, S, H = 2, 8, 32
    Q, V = H, 2 * H
    key = jax.random.PRNGKey(0)
    kq, kpk, kv, kwq, kve = jax.random.split(key, 5)
    query = jax.random.normal(kq, (B, 1, Q), dtype=jnp.float32)
    proj_key = jax.random.normal(kpk, (B, S, H), dtype=jnp.float32)
    value = jax.random.normal(kv, (B, S, V), dtype=jnp.float32)
    wq = jax.random.normal(kwq, (Q, H), dtype=jnp.float32) / jnp.sqrt(Q)   # query_layer.weight.T
    ve = jax.random.normal(kve, (H, 1), dtype=jnp.float32) / jnp.sqrt(H)   # energy_layer.weight.T
    lengths = jnp.array([S, 5])
    mask = (jnp.arange(S)[None, None, :] < lengths[:, None, None]).astype(jnp.int32)

    ctx, alphas = bahdanau_attention(query, proj_key, value, mask, wq, ve)
    jax.block_until_ready((ctx, alphas))
    ref_ctx, ref_alphas = reference(query, proj_key, value, mask, wq, ve)
    np.testing.assert_allclose(np.asarray(ctx), np.asarray(ref_ctx), rtol=1e-5, atol=1e-5)
    np.testing.assert_allclose(np.asarray(alphas), np.asarray(ref_alphas), rtol=1e-5, atol=1e-5)

    # ---- Test 2: multi-step grid with a remainder block + bf16 streaming ----
    B2, S2, H2 = 20, 128, 64
    Q2, V2 = H2, 2 * H2
    k2 = jax.random.PRNGKey(0)
    kq, kpk, kv, kwq, kve, kl = jax.random.split(jax.random.fold_in(k2, 1), 6)
    query2 = jax.random.normal(kq, (B2, 1, Q2), dtype=jnp.float32)
    proj_key2 = jax.random.normal(kpk, (B2, S2, H2), dtype=jnp.float32)
    value2 = jax.random.normal(kv, (B2, S2, V2), dtype=jnp.float32)
    wq2 = jax.random.normal(kwq, (Q2, H2), dtype=jnp.float32) / jnp.sqrt(Q2)
    ve2 = jax.random.normal(kve, (H2, 1), dtype=jnp.float32) / jnp.sqrt(H2)
    lengths2 = jax.random.randint(kl, (B2,), 1, S2 + 1)
    mask2 = (jnp.arange(S2)[None, None, :] < lengths2[:, None, None]).astype(jnp.int32)

    ctx2, alphas2 = bahdanau_attention(query2, proj_key2, value2, mask2, wq2, ve2,
                                       block_b=16, stream_dtype=jnp.bfloat16)
    jax.block_until_ready((ctx2, alphas2))
    ref_ctx2, ref_alphas2 = reference(query2, proj_key2, value2, mask2, wq2, ve2)
    np.testing.assert_allclose(np.asarray(ctx2), np.asarray(ref_ctx2), rtol=5e-2, atol=5e-2)
    np.testing.assert_allclose(np.asarray(alphas2), np.asarray(ref_alphas2), rtol=5e-2, atol=5e-2)

    print("KERNEL_OK")
</pallas_src>

<mosaic_0001>
module attributes {stable_mosaic.version = 11 : i64} {
  func.func @_bahdanau_kernel(%arg0: i32, %arg1: memref<2x1xi32, #tpu.memory_space<vmem>>, %arg2: memref<2x32xf32, #tpu.memory_space<vmem>>, %arg3: memref<2x8x32xf32, #tpu.memory_space<vmem>>, %arg4: memref<2x8x64xf32, #tpu.memory_space<vmem>>, %arg5: memref<32x32xf32, #tpu.memory_space<vmem>>, %arg6: memref<1x32xf32, #tpu.memory_space<vmem>>, %arg7: memref<2x64xf32, #tpu.memory_space<vmem>>, %arg8: memref<2x8xf32, #tpu.memory_space<vmem>>) attributes {dimension_semantics = [#tpu.dimension_semantics<parallel>], iteration_bounds = array<i64: 1>, scalar_prefetch = 0 : i64, scratch_operands = 0 : i64, tpu.core_type = #tpu.core_type<tc>, window_params = [{transform_indices = @transform_0, window_bounds = array<i64: 2, 1>}, {transform_indices = @transform_1, window_bounds = array<i64: 2, 32>}, {transform_indices = @transform_2, window_bounds = array<i64: 2, 8, 32>}, {transform_indices = @transform_3, window_bounds = array<i64: 2, 8, 64>}, {pipeline_mode = #tpu.pipeline_mode<synchronous>, transform_indices = @transform_4, window_bounds = array<i64: 32, 32>}, {pipeline_mode = #tpu.pipeline_mode<synchronous>, transform_indices = @transform_5, window_bounds = array<i64: 1, 32>}, {transform_indices = @transform_6, window_bounds = array<i64: 2, 64>}, {transform_indices = @transform_7, window_bounds = array<i64: 2, 8>}]} {
    %c0 = arith.constant 0 : index
    %c0_0 = arith.constant 0 : index
    %0 = vector.load %arg2[%c0, %c0_0] : memref<2x32xf32, #tpu.memory_space<vmem>>, vector<2x32xf32>
    %c0_1 = arith.constant 0 : index
    %c0_2 = arith.constant 0 : index
    %1 = vector.load %arg5[%c0_1, %c0_2] : memref<32x32xf32, #tpu.memory_space<vmem>>, vector<32x32xf32>
    %cst = arith.constant dense<0.000000e+00> : vector<2x32xf32>
    %2 = tpu.matmul %0, %1, %cst {dimension_numbers = #tpu.dot_dimension_numbers<[1], [0], [0], [1], [0, 0, 1, 1], [], []>} : vector<2x32xf32>, vector<32x32xf32>, vector<2x32xf32> -> vector<2x32xf32>
    %c0_3 = arith.constant 0 : index
    %c0_4 = arith.constant 0 : index
    %3 = vector.load %arg6[%c0_3, %c0_4] : memref<1x32xf32, #tpu.memory_space<vmem>>, vector<1x32xf32>
    %cst_5 = arith.constant 0.000000e+00 : f32
    %4 = vector.broadcast %cst_5 : f32 to vector<2x8x1xf32>
    %c0_6 = arith.constant 0 : index
    %c0_7 = arith.constant 0 : index
    %c0_8 = arith.constant 0 : index
    %5 = vector.load %arg3[%c0_6, %c0_7, %c0_8] : memref<2x8x32xf32, #tpu.memory_space<vmem>>, vector<2x8x32xf32>
    %6 = vector.shape_cast %2 : vector<2x32xf32> to vector<2x1x32xf32>
    %7 = vector.broadcast %6 : vector<2x1x32xf32> to vector<2x8x32xf32>
    %8 = arith.addf %7, %5 : vector<2x8x32xf32>
    %9 = math.tanh %8 : vector<2x8x32xf32>
    %10 = vector.shape_cast %3 : vector<1x32xf32> to vector<1x1x32xf32>
    %11 = vector.broadcast %10 : vector<1x1x32xf32> to vector<2x8x32xf32>
    %12 = arith.mulf %9, %11 : vector<2x8x32xf32>
    %cst_9 = arith.constant dense<0.000000e+00> : vector<2x8xf32>
    %13 = vector.multi_reduction <add>, %12, %cst_9 [2] : vector<2x8x32xf32> to vector<2x8xf32>
    %14 = vector.shape_cast %13 : vector<2x8xf32> to vector<2x8x1xf32>
    %15 = arith.addf %4, %14 : vector<2x8x1xf32>
    %16 = tpu.iota {dimensions = array<i32: 1>} : vector<2x8x1xi32>
    %c0_10 = arith.constant 0 : index
    %c0_11 = arith.constant 0 : index
    %17 = vector.load %arg1[%c0_10, %c0_11] : memref<2x1xi32, #tpu.memory_space<vmem>>, vector<2x1xi32>
    %18 = vector.shape_cast %17 : vector<2x1xi32> to vector<2x1x1xi32>
    %19 = vector.broadcast %18 : vector<2x1x1xi32> to vector<2x8x1xi32>
    %20 = arith.cmpi slt, %16, %19 : vector<2x8x1xi32>
    %cst_12 = arith.constant -1.000000e+30 : f32
    %21 = vector.broadcast %cst_12 : f32 to vector<2x8x1xf32>
    %22 = arith.select %20, %15, %21 : vector<2x8x1xi1>, vector<2x8x1xf32>
    %cst_13 = arith.constant dense<0xFF800000> : vector<2x1xf32>
    %23 = vector.multi_reduction <maximumf>, %22, %cst_13 [1] : vector<2x8x1xf32> to vector<2x1xf32>
    %24 = vector.shape_cast %23 : vector<2x1xf32> to vector<2x1x1xf32>
    %25 = vector.broadcast %24 : vector<2x1x1xf32> to vector<2x8x1xf32>
    %26 = arith.subf %22, %25 : vector<2x8x1xf32>
    %27 = math.exp %26 : vector<2x8x1xf32>
    %cst_14 = arith.constant dense<0.000000e+00> : vector<2x1xf32>
    %28 = vector.multi_reduction <add>, %27, %cst_14 [1] : vector<2x8x1xf32> to vector<2x1xf32>
    %29 = vector.shape_cast %28 : vector<2x1xf32> to vector<2x1x1xf32>
    %30 = tpu.reciprocal %29 {approx = true} : vector<2x1x1xf32> -> vector<2x1x1xf32>
    %31 = arith.mulf %29, %30 : vector<2x1x1xf32>
    %cst_15 = arith.constant 2.000000e+00 : f32
    %32 = vector.broadcast %cst_15 : f32 to vector<2x1x1xf32>
    %33 = arith.subf %32, %31 : vector<2x1x1xf32>
    %34 = arith.mulf %30, %33 : vector<2x1x1xf32>
    %cst_16 = arith.constant 0.000000e+00 : f32
    %35 = vector.broadcast %cst_16 : f32 to vector<2x1x64xf32>
    %c0_17 = arith.constant 0 : index
    %c0_18 = arith.constant 0 : index
    %c0_19 = arith.constant 0 : index
    %36 = vector.load %arg4[%c0_17, %c0_18, %c0_19] : memref<2x8x64xf32, #tpu.memory_space<vmem>>, vector<2x8x64xf32>
    %37 = vector.broadcast %27 : vector<2x8x1xf32> to vector<2x8x64xf32>
    %38 = arith.mulf %37, %36 : vector<2x8x64xf32>
    %cst_20 = arith.constant dense<0.000000e+00> : vector<2x64xf32>
    %39 = vector.multi_reduction <add>, %38, %cst_20 [1] : vector<2x8x64xf32> to vector<2x64xf32>
    %40 = vector.shape_cast %39 : vector<2x64xf32> to vector<2x1x64xf32>
    %41 = arith.addf %35, %40 : vector<2x1x64xf32>
    %42 = vector.shape_cast %41 : vector<2x1x64xf32> to vector<2x64xf32>
    %43 = vector.shape_cast %34 : vector<2x1x1xf32> to vector<2x1xf32>
    %44 = vector.broadcast %43 : vector<2x1xf32> to vector<2x64xf32>
    %45 = arith.mulf %42, %44 : vector<2x64xf32>
    %c0_21 = arith.constant 0 : index
    %c0_22 = arith.constant 0 : index
    %46 = vector.load %arg7[%c0_21, %c0_22] : memref<2x64xf32, #tpu.memory_space<vmem>>, vector<2x64xf32>
    tpu.vector_store %arg7[%c0_21, %c0_22], %45 {strides = array<i32>} : memref<2x64xf32, #tpu.memory_space<vmem>>, vector<2x64xf32>,
    %47 = vector.shape_cast %27 : vector<2x8x1xf32> to vector<2x8xf32>
    %48 = vector.shape_cast %34 : vector<2x1x1xf32> to vector<2x1xf32>
    %49 = vector.broadcast %48 : vector<2x1xf32> to vector<2x8xf32>
    %50 = arith.mulf %47, %49 : vector<2x8xf32>
    %c0_23 = arith.constant 0 : index
    %c0_24 = arith.constant 0 : index
    %51 = vector.load %arg8[%c0_23, %c0_24] : memref<2x8xf32, #tpu.memory_space<vmem>>, vector<2x8xf32>
    tpu.vector_store %arg8[%c0_23, %c0_24], %50 {strides = array<i32>} : memref<2x8xf32, #tpu.memory_space<vmem>>, vector<2x8xf32>,
    return
  }
  func.func @transform_0(%arg0: i32) -> (i32, i32) {
    %c0_i32 = arith.constant 0 : i32
    %c0_i32_0 = arith.constant 0 : i32
    return %arg0, %c0_i32 : i32, i32
  }
  func.func @transform_1(%arg0: i32) -> (i32, i32) {
    %c0_i32 = arith.constant 0 : i32
    %c0_i32_0 = arith.constant 0 : i32
    return %arg0, %c0_i32 : i32, i32
  }
  func.func @transform_2(%arg0: i32) -> (i32, i32, i32) {
    %c0_i32 = arith.constant 0 : i32
    %c0_i32_0 = arith.constant 0 : i32
    %c0_i32_1 = arith.constant 0 : i32
    return %arg0, %c0_i32, %c0_i32_0 : i32, i32, i32
  }
  func.func @transform_3(%arg0: i32) -> (i32, i32, i32) {
    %c0_i32 = arith.constant 0 : i32
    %c0_i32_0 = arith.constant 0 : i32
    %c0_i32_1 = arith.constant 0 : i32
    return %arg0, %c0_i32, %c0_i32_0 : i32, i32, i32
  }
  func.func @transform_4(%arg0: i32) -> (i32, i32) {
    %c0_i32 = arith.constant 0 : i32
    %c0_i32_0 = arith.constant 0 : i32
    %c0_i32_1 = arith.constant 0 : i32
    return %c0_i32, %c0_i32_0 : i32, i32
  }
  func.func @transform_5(%arg0: i32) -> (i32, i32) {
    %c0_i32 = arith.constant 0 : i32
    %c0_i32_0 = arith.constant 0 : i32
    %c0_i32_1 = arith.constant 0 : i32
    return %c0_i32, %c0_i32_0 : i32, i32
  }
  func.func @transform_6(%arg0: i32) -> (i32, i32) {
    %c0_i32 = arith.constant 0 : i32
    %c0_i32_0 = arith.constant 0 : i32
    return %arg0, %c0_i32 : i32, i32
  }
  func.func @transform_7(%arg0: i32) -> (i32, i32) {
    %c0_i32 = arith.constant 0 : i32
    %c0_i32_0 = arith.constant 0 : i32
    return %arg0, %c0_i32 : i32, i32
  }
}

</mosaic_0001>

<llo_original>
// kernel: tpu_custom_call.1
$region0: #{tpu_custom_call.1}
  #allocation0 [shape = 'u32[]', space=smem, size = 0x4, offset = 0x4, fixed_abs, tag = 'smem constant byte address 0x4 - core index']
  #allocation1 [shape = 'u32[144,128]{1,0:T(1,128)}', space=vmem, size = 0x12000, scoped, tag = 'internal scratch']
  %s0 = inlined_call_operand.vmem [shape: s32[2,1], index: 0, kind: input, shape index: {}]
  %s1 = inlined_call_operand.vmem [shape: f32[2,32], index: 1, kind: input, shape index: {}]
  %s2 = inlined_call_operand.hbm [shape: f32[2,8,32], index: 2, kind: input, shape index: {}]
  %s3 = inlined_call_operand.hbm [shape: f32[2,8,64], index: 3, kind: input, shape index: {}]
  %s4 = inlined_call_operand.hbm [shape: f32[32,32], index: 4, kind: input, shape index: {}]
  %s5 = inlined_call_operand.vmem [shape: f32[1,32], index: 5, kind: input, shape index: {}]
  %s6 = inlined_call_operand.hbm [shape: f32[2,64], index: 6, kind: output, shape index: {0}]
  %s7 = inlined_call_operand.hbm [shape: f32[2,8], index: 7, kind: output, shape index: {1}]
  %8 = xla_tuple %s6, %s7
  %s9 = sld [smem:[#allocation0]]
  $region54: #{tpu_custom_call.1} parent=0
    _
  %s11 = ssub.s32 1, %s9
  %s12 = scalar_select 0, %s11, %s9
  $region1: #{tpu_custom_call.1} parent=0
    #allocation2 [shape = 'u8[8192]{0}', space=vmem, size = 0x2000, scoped, tag = 'input window, operand 2, single buffered']
    #allocation3 [shape = 's32[1]{0}', space=sflag, size = 0x4, scoped, tag = 'scoped memory for tpu_custom_call.1']
    #allocation4 [shape = 's32[1]{0}', space=sflag, size = 0x4, scoped, tag = 'scoped memory for tpu_custom_call.1']
    #allocation5 [shape = 'u8[8192]{0}', space=vmem, size = 0x2000, scoped, tag = 'input window, operand 3, single buffered']
    #allocation6 [shape = 's32[1]{0}', space=sflag, size = 0x4, scoped, tag = 'scoped memory for tpu_custom_call.1']
    #allocation7 [shape = 'u8[16384]{0}', space=vmem, size = 0x4000, scoped, tag = 'input window, operand 4, single buffered']
    #allocation8 [shape = 'u8[1024]{0}', space=vmem, size = 0x400, scoped, tag = 'output window, operand 0, single buffered']
    #allocation9 [shape = 'u8[1024]{0}', space=vmem, size = 0x400, scoped, tag = 'output window, operand 1, single buffered']
    #allocation10 [shape = 's32[1]{0}', space=sflag, size = 0x4, scoped, tag = 'scoped memory for tpu_custom_call.1']
    %13 = vsyncpa [#allocation3], 0
    %14 = vsyncpa [#allocation6], 0
    %15 = vsyncpa [#allocation4], 0
    %16 = vsyncpa [#allocation10], 0
    // Predicated region
    $region2: #{tpu_custom_call.1} parent=1 // pred_check
      _
    $region3: #{tpu_custom_call.1} parent=1 // pred_check_branch
      %18 = sbr.rel (0) target = $region5
    $region4: #{tpu_custom_call.1} parent=1 // pred_region
      _
    $region5: #{tpu_custom_call.1} parent=1 // pred_fallthru
      _
    // Predicated region
    $region6: #{tpu_custom_call.1} parent=1 // pred_check
      _
    $region7: #{tpu_custom_call.1} parent=1 // pred_check_branch
      %20 = sbr.rel (0) target = $region9
    $region8: #{tpu_custom_call.1} parent=1 // pred_region
      _
    $region9: #{tpu_custom_call.1} parent=1 // pred_fallthru
      _
    // Predicated region
    $region10: #{tpu_custom_call.1} parent=1 // pred_check
      _
    $region11: #{tpu_custom_call.1} parent=1 // pred_check_branch
      %22 = sbr.rel (0) target = $region13
    $region12: #{tpu_custom_call.1} parent=1 // pred_region
      %s24 = ssub.s32 256, 256
      %25 = vsyncadd [#allocation3], %s24
      %s26 = sshll.u32 [#allocation2], 4
      %s27 = int_to_ptr.vmem [resolvable:$true] %s26
      %32 = dma.hbm_to_vmem [thread:$0]  %s2, 256, %s27, [#allocation3], 128, 128, 8
    $region13: #{tpu_custom_call.1} parent=1 // pred_fallthru
      _
    // Predicated region
    $region14: #{tpu_custom_call.1} parent=1 // pred_check
      _
    $region15: #{tpu_custom_call.1} parent=1 // pred_check_branch
      %34 = sbr.rel (0) target = $region17
    $region16: #{tpu_custom_call.1} parent=1 // pred_region
      %s36 = ssub.s32 256, 256
      %37 = vsyncadd [#allocation6], %s36
      %s38 = sshll.u32 [#allocation5], 4
      %s39 = int_to_ptr.vmem [resolvable:$true] %s38
      %44 = dma.hbm_to_vmem [thread:$0]  %s3, 256, %s39, [#allocation6], 128, 128, 8
    $region17: #{tpu_custom_call.1} parent=1 // pred_fallthru
      _
    // Predicated region
    $region18: #{tpu_custom_call.1} parent=1 // pred_check
      _
    $region19: #{tpu_custom_call.1} parent=1 // pred_check_branch
      %46 = sbr.rel (0) target = $region21
    $region20: #{tpu_custom_call.1} parent=1 // pred_region
      %s48 = ssub.s32 512, 512
      %49 = vsyncadd [#allocation6], %s48
      %s50 = sshll.u32 [#allocation7], 4
      %s51 = int_to_ptr.vmem [resolvable:$true] %s50
      %56 = dma.hbm_to_vmem [thread:$0]  %s4, 512, %s51, [#allocation6], 128, 128, 8
    $region21: #{tpu_custom_call.1} parent=1 // pred_fallthru
      _
    // Predicated region
    $region22: #{tpu_custom_call.1} parent=1 // pred_check
      _
    $region23: #{tpu_custom_call.1} parent=1 // pred_check_branch
      %58 = sbr.rel (0) target = $region25
    $region24: #{tpu_custom_call.1} parent=1 // pred_region
      _
    $region25: #{tpu_custom_call.1} parent=1 // pred_fallthru
      _
    // Predicated region
    $region26: #{tpu_custom_call.1} parent=1 // pred_check
      _
    $region27: #{tpu_custom_call.1} parent=1 // pred_check_branch
      %60 = sbr.rel (0) target = $region29
    $region28: #{tpu_custom_call.1} parent=1 // pred_region
      %61 = dma.done [#allocation3], 256
    $region29: #{tpu_custom_call.1} parent=1 // pred_fallthru
      _
    // Predicated region
    $region30: #{tpu_custom_call.1} parent=1 // pred_check
      _
    $region31: #{tpu_custom_call.1} parent=1 // pred_check_branch
      %63 = sbr.rel (0) target = $region33
    $region32: #{tpu_custom_call.1} parent=1 // pred_region
      %64 = dma.done [#allocation6], 256
    $region33: #{tpu_custom_call.1} parent=1 // pred_fallthru
      _
    // Predicated region
    $region34: #{tpu_custom_call.1} parent=1 // pred_check
      _
    $region35: #{tpu_custom_call.1} parent=1 // pred_check_branch
      %66 = sbr.rel (0) target = $region37
    $region36: #{tpu_custom_call.1} parent=1 // pred_region
      %67 = dma.done [#allocation6], 512
    $region37: #{tpu_custom_call.1} parent=1 // pred_fallthru
      _
    %v68 = vld [vmem:[%s1] sm:$0x3]
    %v69 = vld [vmem:[#allocation7] sm:$0xff]
    %v70 = vld [vmem:[#allocation7 + $0x8] sm:$0xff]
    %v71 = vld [vmem:[#allocation7 + $0x10] sm:$0xff]
    %v72 = vld [vmem:[#allocation7 + $0x18] sm:$0xff]
    %vm73 = vcmask 261120
    %v75 = vsel %vm73, %v68, 0
    %77 = vmatprep.subr.mxu0 0.0
    %78 = vmatpush1.msra.mxu0 %v69
    %79 = vmatprep.subr.mxu0 0.0
    %80 = vmatpush1.msra.mxu0 %v70
    %81 = vmatprep.subr.mxu0 0.0
    %82 = vmatpush1.msra.mxu0 %v71
    %83 = vmatprep.subr.mxu0 0.0
    %84 = vmatpush1.msra.mxu0 %v72
    %85 = vmatprep.subr.mxu0 0.0
    %86 = vmatpush1.msra.mxu0 0.0
    %87 = vmatprep.subr.mxu0 0.0
    %88 = vmatpush1.msra.mxu0 0.0
    %89 = vmatprep.subr.mxu0 0.0
    %90 = vmatpush1.msra.mxu0 0.0
    %91 = vmatprep.subr.mxu0 0.0
    %92 = vmatpush1.msra.mxu0 0.0
    %93 = vmatprep.subr.mxu0 0.0
    %94 = vmatpush1.msra.mxu0 0.0
    %95 = vmatprep.subr.mxu0 0.0
    %96 = vmatpush1.msra.mxu0 0.0
    %97 = vmatprep.subr.mxu0 0.0
    %98 = vmatpush1.msra.mxu0 0.0
    %99 = vmatprep.subr.mxu0 0.0
    %100 = vmatpush1.msra.mxu0 0.0
    %101 = vmatprep.subr.mxu0 0.0
    %102 = vmatpush1.msra.mxu0 0.0
    %103 = vmatprep.subr.mxu0 0.0
    %104 = vmatpush1.msra.mxu0 0.0
    %105 = vmatprep.subr.mxu0 0.0
    %106 = vmatpush1.msra.mxu0 0.0
    %107 = vmatprep.subr.mxu0 0.0
    %108 = vmatpush1.msra.mxu0 0.0
    %109 = vmatprep.subr.mxu0 0.0
    %110 = vmatpush1.msra.mxu0 0.0
    %111 = vmatprep.subr.mxu0 0.0
    %112 = vmatpush1.msra.mxu0 0.0
    %113 = vmatprep.subr.mxu0 0.0
    %114 = vmatpush1.msra.mxu0 0.0
    %115 = vmatprep.subr.mxu0 0.0
    %116 = vmatpush1.msra.mxu0 0.0
    %117 = vmatprep.subr.mxu0 0.0
    %118 = vmatpush1.msra.mxu0 0.0
    %119 = vmatprep.subr.mxu0 0.0
    %120 = vmatpush1.msra.mxu0 0.0
    %121 = vmatprep.subr.mxu0 0.0
    %122 = vmatpush1.msra.mxu0 0.0
    %123 = vmatprep.subr.mxu0 0.0
    %124 = vmatpush1.msra.mxu0 0.0
    %125 = vmatprep.subr.mxu0 0.0
    %126 = vmatpush1.msra.mxu0 0.0
    %127 = vmatprep.subr.mxu0 0.0
    %128 = vmatpush1.msra.mxu0 0.0
    %129 = vmatprep.subr.mxu0 0.0
    %130 = vmatpush1.msra.mxu0 0.0
    %131 = vmatprep.subr.mxu0 0.0
    %132 = vmatpush1.msra.mxu0 0.0
    %133 = vmatprep.subr.mxu0 0.0
    %134 = vmatpush1.msra.mxu0 0.0
    %135 = vmatprep.subr.mxu0 0.0
    %136 = vmatpush1.msra.mxu0 0.0
    %137 = vmatprep.subr.mxu0 0.0
    %138 = vmatpush1.msra.mxu0 0.0
    %139 = vmatprep.subr.mxu0 0.0
    %140 = vmatpush1.msra.mxu0 0.0
    %141 = vmatprep.mubr.f32.mxu0 0.0
    %142 = vmatmul.mubr.f32.gmra.mrb[0].mxu0 %v75
    %v143 = vpop.f32.mrb[0].mxu0
    %v144 = vadd.f32 0.0, %v143
    %v145 = vpop.f32.mrb[0].mxu0
    %146 = vdwg.mxu0
    %v147 = vld [vmem:[%s5] sm:$0x1]
    %v148 = vld [vmem:[#allocation2] sm:$0xff]
    %v149 = vld [vmem:[#allocation2 + $0x8] sm:$0xff]
    %v152 = vunpack.c.l.s4 1966171168
    %v153 = vunpack.c.0.s8 %v152
    %v154 = vlaneseq
    %v155 = vshrl.u32 %v154, 7
    %v156 = vsub.s32 %v153, %v155
    %v157 = vrot.slane %v144, %v156
    %v158 = vcombine.high %v157, %v157
    %v160 = vunpack.c.l.s4 1966171168
    %v161 = vunpack.c.0.s8 %v160
    %v162 = vlaneseq
    %v163 = vshrl.u32 %v162, 7
    %v164 = vsub.s32 %v161, %v163
    %v165 = vrot.slane %v157, %v164
    %v167 = vunpack.c.l.s4 1966171168
    %v168 = vunpack.c.0.s8 %v167
    %v169 = vlaneseq
    %v170 = vshrl.u32 %v169, 7
    %v171 = vsub.s32 %v168, %v170
    %v172 = vrot.slane %v158, %v171
    %v173 = vlaneseq
    %v174 = vshrl.u32 %v173, 7
    %v175 = vsub.s32 0, %v174
    %v176 = vrot.slane %v165, %v175
    %v177 = vlaneseq
    %v178 = vshrl.u32 %v177, 7
    %v179 = vsub.s32 0, %v178
    %v180 = vrot.slane %v172, %v179
    %v183 = vadd.f32 %v176, %v148
    %v184 = vadd.f32 %v180, %v149
    %v185 = vtanh.pop %v183
    %v186 = vtanh.pop %v184
    %v188 = vlaneseq
    %v189 = vshrl.u32 %v188, 7
    %v190 = vsub.s32 0, %v189
    %v191 = vrot.slane %v147, %v190
    %v193 = vmul.f32 %v185, %v191
    %v194 = vmul.f32 %v186, %v191
    %v195 = vsel %vm73, %v193, 0.0
    %196 = vadd.xlane.f32.xlu0 %v195
    %v197 = vpop.xlane.xlu0 %196
    %v198 = vsel %vm73, %v194, 0.0
    %199 = vadd.xlane.f32.xlu0 %v198
    %v200 = vpop.xlane.xlu0 %199
    %v201 = vadd.f32 %v197, 0.0
    %v202 = vadd.f32 %v200, 0.0
    %v203 = vlaneseq
    %v204 = vshrl.u32 %v203, 7
    %v205 = vld [vmem:[%s0] sm:$0x3]
    %v207 = vunpack.c.l.s4 1966171168
    %v208 = vunpack.c.0.s8 %v207
    %v209 = vlaneseq
    %v210 = vshrl.u32 %v209, 7
    %v211 = vsub.s32 %v208, %v210
    %v212 = vrot.slane %v205, %v211
    %v213 = vcombine.high %v212, %v212
    %v215 = vunpack.c.l.s4 1966171168
    %v216 = vunpack.c.0.s8 %v215
    %v217 = vlaneseq
    %v218 = vshrl.u32 %v217, 7
    %v219 = vsub.s32 %v216, %v218
    %v220 = vrot.slane %v212, %v219
    %v222 = vunpack.c.l.s4 1966171168
    %v223 = vunpack.c.0.s8 %v222
    %v224 = vlaneseq
    %v225 = vshrl.u32 %v224, 7
    %v226 = vsub.s32 %v223, %v225
    %v227 = vrot.slane %v213, %v226
    %v228 = vlaneseq
    %v229 = vshrl.u32 %v228, 7
    %v230 = vsub.s32 0, %v229
    %v231 = vrot.slane %v220, %v230
    %v232 = vlaneseq
    %v233 = vshrl.u32 %v232, 7
    %v234 = vsub.s32 0, %v233
    %v235 = vrot.slane %v227, %v234
    %vm236 = vcmp.lt.s32.totalorder %v204, %v231
    %vm237 = vcmp.lt.s32.totalorder %v204, %v235
    %v238 = vsel %vm236, %v201, -1e+30
    %v239 = vsel %vm237, %v202, -1e+30
    %vm240 = vcmask 7168
    %v241 = vsel %vm240, %v238, -inf
    %v242 = vrot.slane %v241, 4
    %v243 = vmax.f32 %v241, %v242
    %v244 = vrot.slane %v243, 2
    %v245 = vmax.f32 %v243, %v244
    %v246 = vrot.slane %v245, 1
    %v247 = vmax.f32 %v245, %v246
    %v248 = vsel %vm240, %v239, -inf
    %v249 = vrot.slane %v248, 4
    %v250 = vmax.f32 %v248, %v249
    %v251 = vrot.slane %v250, 2
    %v252 = vmax.f32 %v250, %v251
    %v253 = vrot.slane %v252, 1
    %v254 = vmax.f32 %v252, %v253
    %v255 = vsub.f32 %v238, %v247
    %v256 = vsub.f32 %v239, %v254
    %v257 = vmul.f32 %v255, 1.442695
    %v258 = vpow.pop %v257
    %v259 = vmul.f32 %v256, 1.442695
    %v260 = vpow.pop %v259
    %v261 = vsel %vm240, %v258, 0.0
    %v262 = vrot.slane %v261, 4
    %v263 = vadd.f32 %v261, %v262
    %v264 = vrot.slane %v263, 2
    %v265 = vadd.f32 %v263, %v264
    %v266 = vrot.slane %v265, 1
    %v267 = vadd.f32 %v265, %v266
    %v268 = vsel %vm240, %v260, 0.0
    %v269 = vrot.slane %v268, 4
    %v270 = vadd.f32 %v268, %v269
    %v271 = vrot.slane %v270, 2
    %v272 = vadd.f32 %v270, %v271
    %v273 = vrot.slane %v272, 1
    %v274 = vadd.f32 %v272, %v273
    %v275 = vrcp.pop %v267
    %v276 = vrcp.pop %v274
    %v277 = vmul.f32 %v267, %v275
    %v278 = vmul.f32 %v274, %v276
    %v279 = vsub.f32 2.0, %v277
    %v280 = vsub.f32 2.0, %v278
    %v281 = vmul.f32 %v275, %v279
    %v282 = vmul.f32 %v276, %v280
    %v283 = vld [vmem:[#allocation5] sm:$0xff]
    %v284 = vld [vmem:[#allocation5 + $0x8] sm:$0xff]
    %286 = vset.pattern.permute.xlu0 0
    %287 = vperm.xlu0 %286, %v258
    %v288 = vpop.permute.xlu0 %287
    %291 = vset.pattern.permute.xlu0 0
    %292 = vperm.xlu0 %291, %v260
    %v293 = vpop.permute.xlu0 %292
    %v295 = vmul.f32 %v288, %v283
    %v296 = vmul.f32 %v293, %v284
    %vm297 = vcmask 523264
    %v298 = vsel %vm297, %v295, 0.0
    %v299 = vrot.slane %v298, 4
    %v300 = vadd.f32 %v298, %v299
    %v301 = vrot.slane %v300, 2
    %v302 = vadd.f32 %v300, %v301
    %v303 = vrot.slane %v302, 1
    %v304 = vadd.f32 %v302, %v303
    %v305 = vsel %vm297, %v296, 0.0
    %v306 = vrot.slane %v305, 4
    %v307 = vadd.f32 %v305, %v306
    %v308 = vrot.slane %v307, 2
    %v309 = vadd.f32 %v307, %v308
    %v310 = vrot.slane %v309, 1
    %v311 = vadd.f32 %v309, %v310
    %v312 = vadd.f32 %v304, 0.0
    %v313 = vadd.f32 %v311, 0.0
    %315 = vset.pattern.permute.xlu0 0
    %316 = vperm.xlu0 %315, %v281
    %v317 = vpop.permute.xlu0 %316
    %320 = vset.pattern.permute.xlu0 0
    %321 = vperm.xlu0 %320, %v282
    %v322 = vpop.permute.xlu0 %321
    %v324 = vmul.f32 %v312, %v317
    %v325 = vmul.f32 %v313, %v322
    %vm328 = vcmask 1041409
    %v329 = vsel %vm328, %v325, %v324
    %vm331 = vcmask 517120
    %332 = vst.msk [vmem:[#allocation8] sm:$0x3] %vm331, %v329
    %v333 = vmul.f32 %v258, %v317
    %v334 = vmul.f32 %v260, %v322
    %337 = vset.pattern.permute.xlu0 0
    %338 = vperm.xlu0 %337, %v333
    %v339 = vpop.permute.xlu0 %338
    %340 = vset.pattern.permute.xlu0 0
    %341 = vperm.xlu0 %340, %v334
    %v342 = vpop.permute.xlu0 %341
    %v343 = vlaneseq
    %v344 = vand.u32 %v343, 127
    %v345 = vlaneseq
    %v346 = vshrl.u32 %v345, 7
    %v347 = vsub.s32 %v344, %v346
    %v348 = vrot.slane %v339, %v347
    %v349 = vlaneseq
    %v350 = vshrl.u32 %v349, 7
    %v351 = vsub.s32 %v344, %v350
    %v352 = vrot.slane %v342, %v351
    %v353 = vsel %vm328, %v352, %v348
    %vm355 = vcmask 58368
    %356 = vst.msk [vmem:[#allocation9] sm:$0x3] %vm355, %v353
    // Predicated region
    $region38: #{tpu_custom_call.1} parent=1 // pred_check
      _
    $region39: #{tpu_custom_call.1} parent=1 // pred_check_branch
      %358 = sbr.rel (0) target = $region41
    $region40: #{tpu_custom_call.1} parent=1 // pred_region
      %s360 = ssub.s32 32, 32
      %361 = vsyncadd [#allocation4], %s360
      %s363 = sshll.u32 [#allocation8], 4
      %s364 = int_to_ptr.vmem [resolvable:$true] %s363
      %366 = dma.vmem_to_hbm [thread:$0]  %s364, 32, %s6, [#allocation4]
    $region41: #{tpu_custom_call.1} parent=1 // pred_fallthru
      _
    // Predicated region
    $region42: #{tpu_custom_call.1} parent=1 // pred_check
      _
    $region43: #{tpu_custom_call.1} parent=1 // pred_check_branch
      %368 = sbr.rel (0) target = $region45
    $region44: #{tpu_custom_call.1} parent=1 // pred_region
      %s370 = ssub.s32 32, 32
      %371 = vsyncadd [#allocation10], %s370
      %s373 = sshll.u32 [#allocation9], 4
      %s374 = int_to_ptr.vmem [resolvable:$true] %s373
      %376 = dma.vmem_to_hbm [thread:$0]  %s374, 32, %s7, [#allocation10]
    $region45: #{tpu_custom_call.1} parent=1 // pred_fallthru
      _
    // Predicated region
    $region46: #{tpu_custom_call.1} parent=1 // pred_check
      _
    $region47: #{tpu_custom_call.1} parent=1 // pred_check_branch
      %378 = sbr.rel (0) target = $region49
    $region48: #{tpu_custom_call.1} parent=1 // pred_region
      %379 = dma.done [#allocation4], 32
    $region49: #{tpu_custom_call.1} parent=1 // pred_fallthru
      _
    // Predicated region
    $region50: #{tpu_custom_call.1} parent=1 // pred_check
      _
    $region51: #{tpu_custom_call.1} parent=1 // pred_check_branch
      %381 = sbr.rel (0) target = $region53
    $region52: #{tpu_custom_call.1} parent=1 // pred_region
      %382 = dma.done [#allocation10], 32
    $region53: #{tpu_custom_call.1} parent=1 // pred_fallthru
      _
    %383 = vsyncpa [#allocation3], 1
    %384 = vsyncpa [#allocation6], 1
    %385 = vsyncpa [#allocation4], 1
    %386 = vsyncpa [#allocation10], 1

</llo_original>
